<compile_context>
chip_gen: v6e
topology: v6e:2x2x1
jax: 0.10.0
libtpu: 0.0.40
codegen_flags: <defaults>
</compile_context>

<pallas_src>
import functools

import jax
import jax.numpy as jnp
from jax.experimental import pallas as pl
from jax.experimental.pallas import tpu as pltpu


def _policy_kernel(x_ref, w1_ref, b1_ref, w2_ref, b2_ref, wa_ref, ba_ref, out_ref):
    # mlp_extractor: two Linear + tanh layers (latent_pi path).
    # The observation scaler is already folded into w1 by the wrapper.
    h1 = jnp.tanh(
        jnp.dot(x_ref[...], w1_ref[...], preferred_element_type=jnp.float32)
        + b1_ref[...]
    )
    h2 = jnp.tanh(
        jnp.dot(h1, w2_ref[...], preferred_element_type=jnp.float32) + b2_ref[...]
    )
    # action_net: Linear -> logits (padded to a lane-dense 128-wide slab; the
    # wrapper slices out the first C columns).
    out_ref[...] = (
        jnp.dot(h2, wa_ref[...], preferred_element_type=jnp.float32) + ba_ref[...]
    ).astype(out_ref.dtype)


def _round_up(x, m):
    return ((x + m - 1) // m) * m


def only_obs_single_action_forward(rgb, scaler, params, *, batch_tile=512):
    """Pallas forward of OnlyObsSingleActionModel (model_type==0).

    rgb:    [B, D] float32 flat observations
    scaler: [D]    float32 per-feature observation scaler
    params: (w1 [D,H], b1 [H], w2 [H,H], b2 [H], wa [H,C], ba [C])
    returns [B, C] float32 Categorical logits
    """
    B, D = rgb.shape
    w1, b1, w2, b2, wa, ba = params
    H = w1.shape[1]
    C = wa.shape[1]

    # ---- one-time (per call here; hoist to init in production) param prep ----
    # Fold the observation scaler into the first layer: x @ (diag(s) @ W1).
    w1_scaled = (scaler[:, None] * w1).astype(jnp.float32)
    b1_2d = b1.reshape(1, H).astype(jnp.float32)
    b2_2d = b2.reshape(1, H).astype(jnp.float32)
    w2_f = w2.astype(jnp.float32)

    # Pad the action head to 128 output lanes so the output store is unmasked.
    C_pad = _round_up(max(C, 1), 128)
    wa_pad = jnp.zeros((H, C_pad), jnp.float32).at[:, :C].set(wa.astype(jnp.float32))
    ba_pad = jnp.zeros((1, C_pad), jnp.float32).at[:, :C].set(
        ba.reshape(1, C).astype(jnp.float32)
    )

    # ---- batch tiling: pipeline the x DMA / writeback against compute -------
    # Requested tile -> number of grid steps -> rebalanced tile (multiple of 8)
    # that covers B with minimal zero-padding for that grid count.
    tb_req = max(8, _round_up(int(batch_tile), 8))
    grid_n = max(1, -(-B // tb_req))                 # ceil(B / tb_req)
    tb = max(8, _round_up(-(-B // grid_n), 8))       # balanced tile size
    B_pad = grid_n * tb                              # ragged batches: zero-pad rows
    if B_pad != B:
        rgb_in = jnp.zeros((B_pad, D), rgb.dtype).at[:B, :].set(rgb)
    else:
        rgb_in = rgb

    def _rep(shape):
        # whole-array block, replicated across the batch grid (kept VMEM-resident)
        return pl.BlockSpec(shape, lambda i, _n=len(shape): (0,) * _n)

    out = pl.pallas_call(
        _policy_kernel,
        out_shape=jax.ShapeDtypeStruct((B_pad, C_pad), jnp.float32),
        grid_spec=pltpu.PrefetchScalarGridSpec(
            num_scalar_prefetch=0,
            grid=(grid_n,),
            in_specs=[
                pl.BlockSpec((tb, D), lambda i: (i, 0)),   # rgb (batch-tiled)
                _rep((D, H)),                              # w1 (scaler folded in)
                _rep((1, H)),                              # b1
                _rep((H, H)),                              # w2
                _rep((1, H)),                              # b2
                _rep((H, C_pad)),                          # action_net weight (padded)
                _rep((1, C_pad)),                          # action_net bias (padded)
            ],
            out_specs=pl.BlockSpec((tb, C_pad), lambda i: (i, 0)),
        ),
        compiler_params=pltpu.CompilerParams(
            dimension_semantics=("parallel",),
        ),
    )(rgb_in, w1_scaled, b1_2d, w2_f, b2_2d, wa_pad, ba_pad)

    # Drop batch padding and lane padding outside the kernel.
    return out[:B, :C]


def reference_forward(rgb, scaler, params):
    """Pure-JAX reference of the same forward pass."""
    w1, b1, w2, b2, wa, ba = params
    x = rgb * scaler[None, :]
    h1 = jnp.tanh(x @ w1 + b1)
    h2 = jnp.tanh(h1 @ w2 + b2)
    return h2 @ wa + ba


if __name__ == "__main__":
    # Small shapes consistent with the module: flat observation vector,
    # two 32-wide MLP layers, num_classes discrete actions.
    B, D, H, C = 8, 32, 32, 4

    key = jax.random.PRNGKey(0)
    k_x, k_s, k1, k2, k3, k4, k5, k6 = jax.random.split(key, 8)

    rgb = jax.random.normal(k_x, (B, D), dtype=jnp.float32)
    scaler = jax.random.uniform(k_s, (D,), dtype=jnp.float32, minval=0.5, maxval=1.5)

    params = (
        jax.random.normal(k1, (D, H), dtype=jnp.float32) * 0.1,  # mlp_extractor layer 1 W
        jax.random.normal(k2, (H,), dtype=jnp.float32) * 0.01,   # layer 1 b
        jax.random.normal(k3, (H, H), dtype=jnp.float32) * 0.1,  # mlp_extractor layer 2 W
        jax.random.normal(k4, (H,), dtype=jnp.float32) * 0.01,   # layer 2 b
        jax.random.normal(k5, (H, C), dtype=jnp.float32) * 0.1,  # action_net W
        jax.random.normal(k6, (C,), dtype=jnp.float32) * 0.01,   # action_net b
    )

    # TODO(synk): model_type==2 (QuantileNetwork .mean(dim=1)) and ==3 (QNetwork raw
    # Q-values) branches select a different wrapped network; only the policy-logits
    # branch (model_type==0, which ==1 shares compute with) is implemented here.
    # TODO(synk): if the real flattened observation dim D is large, add a K-tiled
    # reduction axis ("arbitrary") for the first matmul instead of whole-row blocks.

    fwd = jax.jit(functools.partial(only_obs_single_action_forward, batch_tile=512))
    logits = jax.block_until_ready(fwd(rgb, scaler, params))

    ref = reference_forward(rgb, scaler, params)
    assert logits.shape == (B, C)
    assert jnp.allclose(logits, ref, atol=1e-5, rtol=1e-5), "mismatch vs reference"

    # Also exercise a batch that actually tiles / pads (grid > 1, ragged B).
    B2 = 1037
    rgb2 = jax.random.normal(jax.random.PRNGKey(1), (B2, D), dtype=jnp.float32)
    logits2 = jax.block_until_ready(
        only_obs_single_action_forward(rgb2, scaler, params, batch_tile=512)
    )
    ref2 = reference_forward(rgb2, scaler, params)
    assert logits2.shape == (B2, C)
    assert jnp.allclose(logits2, ref2, atol=1e-5, rtol=1e-5), "tiled mismatch vs reference"

    print("KERNEL_OK")
</pallas_src>

<mosaic_0001>
module attributes {stable_mosaic.version = 11 : i64} {
  func.func @_policy_kernel(%arg0: i32, %arg1: memref<8x32xf32, #tpu.memory_space<vmem>>, %arg2: memref<32x32xf32, #tpu.memory_space<vmem>>, %arg3: memref<1x32xf32, #tpu.memory_space<vmem>>, %arg4: memref<32x32xf32, #tpu.memory_space<vmem>>, %arg5: memref<1x32xf32, #tpu.memory_space<vmem>>, %arg6: memref<32x128xf32, #tpu.memory_space<vmem>>, %arg7: memref<1x128xf32, #tpu.memory_space<vmem>>, %arg8: memref<8x128xf32, #tpu.memory_space<vmem>>) attributes {dimension_semantics = [#tpu.dimension_semantics<parallel>], iteration_bounds = array<i64: 1>, scalar_prefetch = 0 : i64, scratch_operands = 0 : i64, tpu.core_type = #tpu.core_type<tc>, window_params = [{transform_indices = @transform_0, window_bounds = array<i64: 8, 32>}, {pipeline_mode = #tpu.pipeline_mode<synchronous>, transform_indices = @transform_1, window_bounds = array<i64: 32, 32>}, {pipeline_mode = #tpu.pipeline_mode<synchronous>, transform_indices = @transform_2, window_bounds = array<i64: 1, 32>}, {pipeline_mode = #tpu.pipeline_mode<synchronous>, transform_indices = @transform_3, window_bounds = array<i64: 32, 32>}, {pipeline_mode = #tpu.pipeline_mode<synchronous>, transform_indices = @transform_4, window_bounds = array<i64: 1, 32>}, {pipeline_mode = #tpu.pipeline_mode<synchronous>, transform_indices = @transform_5, window_bounds = array<i64: 32, 128>}, {pipeline_mode = #tpu.pipeline_mode<synchronous>, transform_indices = @transform_6, window_bounds = array<i64: 1, 128>}, {transform_indices = @transform_7, window_bounds = array<i64: 8, 128>}]} {
    %c0 = arith.constant 0 : index
    %c0_0 = arith.constant 0 : index
    %0 = vector.load %arg1[%c0, %c0_0] : memref<8x32xf32, #tpu.memory_space<vmem>>, vector<8x32xf32>
    %c0_1 = arith.constant 0 : index
    %c0_2 = arith.constant 0 : index
    %1 = vector.load %arg2[%c0_1, %c0_2] : memref<32x32xf32, #tpu.memory_space<vmem>>, vector<32x32xf32>
    %cst = arith.constant dense<0.000000e+00> : vector<8x32xf32>
    %2 = tpu.matmul %0, %1, %cst {dimension_numbers = #tpu.dot_dimension_numbers<[1], [0], [0], [1], [0, 0, 1, 1], [], []>} : vector<8x32xf32>, vector<32x32xf32>, vector<8x32xf32> -> vector<8x32xf32>
    %c0_3 = arith.constant 0 : index
    %c0_4 = arith.constant 0 : index
    %3 = vector.load %arg3[%c0_3, %c0_4] : memref<1x32xf32, #tpu.memory_space<vmem>>, vector<1x32xf32>
    %4 = vector.broadcast %3 : vector<1x32xf32> to vector<8x32xf32>
    %5 = arith.addf %2, %4 : vector<8x32xf32>
    %6 = math.tanh %5 : vector<8x32xf32>
    %c0_5 = arith.constant 0 : index
    %c0_6 = arith.constant 0 : index
    %7 = vector.load %arg4[%c0_5, %c0_6] : memref<32x32xf32, #tpu.memory_space<vmem>>, vector<32x32xf32>
    %cst_7 = arith.constant dense<0.000000e+00> : vector<8x32xf32>
    %8 = tpu.matmul %6, %7, %cst_7 {dimension_numbers = #tpu.dot_dimension_numbers<[1], [0], [0], [1], [0, 0, 1, 1], [], []>} : vector<8x32xf32>, vector<32x32xf32>, vector<8x32xf32> -> vector<8x32xf32>
    %c0_8 = arith.constant 0 : index
    %c0_9 = arith.constant 0 : index
    %9 = vector.load %arg5[%c0_8, %c0_9] : memref<1x32xf32, #tpu.memory_space<vmem>>, vector<1x32xf32>
    %10 = vector.broadcast %9 : vector<1x32xf32> to vector<8x32xf32>
    %11 = arith.addf %8, %10 : vector<8x32xf32>
    %12 = math.tanh %11 : vector<8x32xf32>
    %c0_10 = arith.constant 0 : index
    %c0_11 = arith.constant 0 : index
    %13 = vector.load %arg6[%c0_10, %c0_11] : memref<32x128xf32, #tpu.memory_space<vmem>>, vector<32x128xf32>
    %cst_12 = arith.constant dense<0.000000e+00> : vector<8x128xf32>
    %14 = tpu.matmul %12, %13, %cst_12 {dimension_numbers = #tpu.dot_dimension_numbers<[1], [0], [0], [1], [0, 0, 1, 1], [], []>} : vector<8x32xf32>, vector<32x128xf32>, vector<8x128xf32> -> vector<8x128xf32>
    %c0_13 = arith.constant 0 : index
    %c0_14 = arith.constant 0 : index
    %15 = vector.load %arg7[%c0_13, %c0_14] : memref<1x128xf32, #tpu.memory_space<vmem>>, vector<1x128xf32>
    %16 = vector.broadcast %15 : vector<1x128xf32> to vector<8x128xf32>
    %17 = arith.addf %14, %16 : vector<8x128xf32>
    %c0_15 = arith.constant 0 : index
    %c0_16 = arith.constant 0 : index
    %18 = vector.load %arg8[%c0_15, %c0_16] : memref<8x128xf32, #tpu.memory_space<vmem>>, vector<8x128xf32>
    tpu.vector_store %arg8[%c0_15, %c0_16], %17 {strides = array<i32>} : memref<8x128xf32, #tpu.memory_space<vmem>>, vector<8x128xf32>,
    return
  }
  func.func @transform_0(%arg0: i32) -> (i32, i32) {
    %c0_i32 = arith.constant 0 : i32
    %c0_i32_0 = arith.constant 0 : i32
    return %arg0, %c0_i32 : i32, i32
  }
  func.func @transform_1(%arg0: i32) -> (i32, i32) {
    %c0_i32 = arith.constant 0 : i32
    %c0_i32_0 = arith.constant 0 : i32
    %c0_i32_1 = arith.constant 0 : i32
    return %c0_i32, %c0_i32_0 : i32, i32
  }
  func.func @transform_2(%arg0: i32) -> (i32, i32) {
    %c0_i32 = arith.constant 0 : i32
    %c0_i32_0 = arith.constant 0 : i32
    %c0_i32_1 = arith.constant 0 : i32
    return %c0_i32, %c0_i32_0 : i32, i32
  }
  func.func @transform_3(%arg0: i32) -> (i32, i32) {
    %c0_i32 = arith.constant 0 : i32
    %c0_i32_0 = arith.constant 0 : i32
    %c0_i32_1 = arith.constant 0 : i32
    return %c0_i32, %c0_i32_0 : i32, i32
  }
  func.func @transform_4(%arg0: i32) -> (i32, i32) {
    %c0_i32 = arith.constant 0 : i32
    %c0_i32_0 = arith.constant 0 : i32
    %c0_i32_1 = arith.constant 0 : i32
    return %c0_i32, %c0_i32_0 : i32, i32
  }
  func.func @transform_5(%arg0: i32) -> (i32, i32) {
    %c0_i32 = arith.constant 0 : i32
    %c0_i32_0 = arith.constant 0 : i32
    %c0_i32_1 = arith.constant 0 : i32
    return %c0_i32, %c0_i32_0 : i32, i32
  }
  func.func @transform_6(%arg0: i32) -> (i32, i32) {
    %c0_i32 = arith.constant 0 : i32
    %c0_i32_0 = arith.constant 0 : i32
    %c0_i32_1 = arith.constant 0 : i32
    return %c0_i32, %c0_i32_0 : i32, i32
  }
  func.func @transform_7(%arg0: i32) -> (i32, i32) {
    %c0_i32 = arith.constant 0 : i32
    %c0_i32_0 = arith.constant 0 : i32
    return %arg0, %c0_i32 : i32, i32
  }
}

</mosaic_0001>

<llo_original>
// kernel: only_obs_single_action_forward.1
$region0: #{only_obs_single_action_forward.1}
  #allocation0 [shape = 'u32[]', space=smem, size = 0x4, offset = 0x4, fixed_abs, tag = 'smem constant byte address 0x4 - core index']
  #allocation1 [shape = 'u32[144,128]{1,0:T(1,128)}', space=vmem, size = 0x12000, scoped, tag = 'internal scratch']
  %s0 = inlined_call_operand.vmem [shape: f32[8,32], index: 0, kind: input, shape index: {}]
  %s1 = inlined_call_operand.vmem [shape: f32[32,32], index: 1, kind: input, shape index: {}]
  %s2 = inlined_call_operand.vmem [shape: f32[1,32], index: 2, kind: input, shape index: {}]
  %s3 = inlined_call_operand.vmem [shape: f32[32,32], index: 3, kind: input, shape index: {}]
  %s4 = inlined_call_operand.vmem [shape: f32[1,32], index: 4, kind: input, shape index: {}]
  %s5 = inlined_call_operand.vmem [shape: f32[32,128], index: 5, kind: input, shape index: {}]
  %s6 = inlined_call_operand.vmem [shape: f32[1,128], index: 6, kind: input, shape index: {}]
  %s7 = inlined_call_operand.vmem [shape: f32[8,128], index: 7, kind: output, shape index: {}]
  %s8 = sld [smem:[#allocation0]]
  $region38: #{only_obs_single_action_forward.1} parent=0
    _
  %s10 = ssub.s32 1, %s8
  %s11 = scalar_select 0, %s10, %s8
  // Predicated region
  $region2: #{only_obs_single_action_forward.1} parent=0 // pred_check
    _
  $region3: #{only_obs_single_action_forward.1} parent=0 // pred_check_branch
    %13 = sbr.rel (0) target = $region5
  $region4: #{only_obs_single_action_forward.1} parent=0 // pred_region
    _
  $region5: #{only_obs_single_action_forward.1} parent=0 // pred_fallthru
    _
  // Predicated region
  $region6: #{only_obs_single_action_forward.1} parent=0 // pred_check
    _
  $region7: #{only_obs_single_action_forward.1} parent=0 // pred_check_branch
    %15 = sbr.rel (0) target = $region9
  $region8: #{only_obs_single_action_forward.1} parent=0 // pred_region
    _
  $region9: #{only_obs_single_action_forward.1} parent=0 // pred_fallthru
    _
  // Predicated region
  $region10: #{only_obs_single_action_forward.1} parent=0 // pred_check
    _
  $region11: #{only_obs_single_action_forward.1} parent=0 // pred_check_branch
    %17 = sbr.rel (0) target = $region13
  $region12: #{only_obs_single_action_forward.1} parent=0 // pred_region
    _
  $region13: #{only_obs_single_action_forward.1} parent=0 // pred_fallthru
    _
  // Predicated region
  $region14: #{only_obs_single_action_forward.1} parent=0 // pred_check
    _
  $region15: #{only_obs_single_action_forward.1} parent=0 // pred_check_branch
    %19 = sbr.rel (0) target = $region17
  $region16: #{only_obs_single_action_forward.1} parent=0 // pred_region
    _
  $region17: #{only_obs_single_action_forward.1} parent=0 // pred_fallthru
    _
  // Predicated region
  $region18: #{only_obs_single_action_forward.1} parent=0 // pred_check
    _
  $region19: #{only_obs_single_action_forward.1} parent=0 // pred_check_branch
    %21 = sbr.rel (0) target = $region21
  $region20: #{only_obs_single_action_forward.1} parent=0 // pred_region
    _
  $region21: #{only_obs_single_action_forward.1} parent=0 // pred_fallthru
    _
  // Predicated region
  $region22: #{only_obs_single_action_forward.1} parent=0 // pred_check
    _
  $region23: #{only_obs_single_action_forward.1} parent=0 // pred_check_branch
    %23 = sbr.rel (0) target = $region25
  $region24: #{only_obs_single_action_forward.1} parent=0 // pred_region
    _
  $region25: #{only_obs_single_action_forward.1} parent=0 // pred_fallthru
    _
  // Predicated region
  $region26: #{only_obs_single_action_forward.1} parent=0 // pred_check
    _
  $region27: #{only_obs_single_action_forward.1} parent=0 // pred_check_branch
    %25 = sbr.rel (0) target = $region29
  $region28: #{only_obs_single_action_forward.1} parent=0 // pred_region
    _
  $region29: #{only_obs_single_action_forward.1} parent=0 // pred_fallthru
    _
  %v26 = vld [vmem:[%s0] sm:$0xff]
  %v27 = vld [vmem:[%s1] sm:$0xff]
  %v28 = vld [vmem:[%s1 + $0x8] sm:$0xff]
  %v29 = vld [vmem:[%s1 + $0x10] sm:$0xff]
  %v30 = vld [vmem:[%s1 + $0x18] sm:$0xff]
  %v31 = vld [vmem:[%s2] sm:$0x1]
  %v33 = vlaneseq
  %v34 = vshrl.u32 %v33, 7
  %v35 = vsub.s32 0, %v34
  %v36 = vrot.slane %v31, %v35
  %vm38 = vcmask 261120
  %v40 = vsel %vm38, %v26, 0
  %42 = vmatprep.subr.mxu0 0.0
  %43 = vmatpush1.msra.mxu0 0.0
  %44 = vmatprep.subr.mxu0 0.0
  %45 = vmatpush1.msra.mxu0 0.0
  %46 = vmatprep.subr.mxu0 0.0
  %47 = vmatpush1.msra.mxu0 0.0
  %48 = vmatprep.subr.mxu0 0.0
  %49 = vmatpush1.msra.mxu0 0.0
  %50 = vmatprep.subr.mxu0 0.0
  %51 = vmatpush1.msra.mxu0 0.0
  %52 = vmatprep.subr.mxu0 0.0
  %53 = vmatpush1.msra.mxu0 0.0
  %54 = vmatprep.subr.mxu0 0.0
  %55 = vmatpush1.msra.mxu0 0.0
  %56 = vmatprep.subr.mxu0 0.0
  %57 = vmatpush1.msra.mxu0 0.0
  %58 = vmatprep.subr.mxu0 0.0
  %59 = vmatpush1.msra.mxu0 0.0
  %60 = vmatprep.subr.mxu0 0.0
  %61 = vmatpush1.msra.mxu0 0.0
  %62 = vmatprep.subr.mxu0 0.0
  %63 = vmatpush1.msra.mxu0 0.0
  %64 = vmatprep.subr.mxu0 0.0
  %65 = vmatpush1.msra.mxu0 0.0
  %66 = vmatprep.subr.mxu0 0.0
  %67 = vmatpush1.msra.mxu0 %v30
  %68 = vmatprep.subr.mxu0 0.0
  %69 = vmatpush1.msra.mxu0 %v29
  %70 = vmatprep.subr.mxu0 0.0
  %71 = vmatpush1.msra.mxu0 %v28
  %72 = vmatprep.subr.mxu0 0.0
  %73 = vmatpush1.msra.mxu0 %v27
  %74 = vmatprep.subr.mxu0 0.0
  %75 = vmatpush2.msra.mxu0 0.0
  %76 = vmatprep.subr.mxu0 0.0
  %77 = vmatpush2.msra.mxu0 0.0
  %78 = vmatprep.subr.mxu0 0.0
  %79 = vmatpush2.msra.mxu0 0.0
  %80 = vmatprep.subr.mxu0 0.0
  %81 = vmatpush2.msra.mxu0 0.0
  %82 = vmatprep.subr.mxu0 0.0
  %83 = vmatpush2.msra.mxu0 0.0
  %84 = vmatprep.subr.mxu0 0.0
  %85 = vmatpush2.msra.mxu0 0.0
  %86 = vmatprep.subr.mxu0 0.0
  %87 = vmatpush2.msra.mxu0 0.0
  %88 = vmatprep.subr.mxu0 0.0
  %89 = vmatpush2.msra.mxu0 0.0
  %90 = vmatprep.subr.mxu0 0.0
  %91 = vmatpush2.msra.mxu0 0.0
  %92 = vmatprep.subr.mxu0 0.0
  %93 = vmatpush2.msra.mxu0 0.0
  %94 = vmatprep.subr.mxu0 0.0
  %95 = vmatpush2.msra.mxu0 0.0
  %96 = vmatprep.subr.mxu0 0.0
  %97 = vmatpush2.msra.mxu0 0.0
  %98 = vmatprep.subr.mxu0 0.0
  %99 = vmatpush2.msra.mxu0 0.0
  %100 = vmatprep.subr.mxu0 0.0
  %101 = vmatpush2.msra.mxu0 0.0
  %102 = vmatprep.subr.mxu0 0.0
  %103 = vmatpush2.msra.mxu0 0.0
  %104 = vmatprep.subr.mxu0 0.0
  %105 = vmatpush2.msra.mxu0 0.0
  %106 = vmatprep.mubr.f32.mxu0 0.0
  %107 = vmatmul.mubr.f32.gmra.mxu0 %v40
  %v108 = vpop.f32.mrf.mxu0
  %v109 = vadd.f32 %v36, %v108
  %v110 = vpop.f32.mrf.mxu0
  %111 = vdwg.mxu0
  %v112 = vtanh.pop %v109
  %v113 = vld [vmem:[%s3] sm:$0xff]
  %v114 = vld [vmem:[%s3 + $0x8] sm:$0xff]
  %v115 = vld [vmem:[%s3 + $0x10] sm:$0xff]
  %v116 = vld [vmem:[%s3 + $0x18] sm:$0xff]
  %v117 = vld [vmem:[%s4] sm:$0x1]
  %v119 = vlaneseq
  %v120 = vshrl.u32 %v119, 7
  %v121 = vsub.s32 0, %v120
  %v122 = vrot.slane %v117, %v121
  %v125 = vsel %vm38, %v112, 0
  %127 = vmatprep.subr.mxu0 0.0
  %128 = vmatpush1.msra.mxu0 0.0
  %129 = vmatprep.subr.mxu0 0.0
  %130 = vmatpush1.msra.mxu0 0.0
  %131 = vmatprep.subr.mxu0 0.0
  %132 = vmatpush1.msra.mxu0 0.0
  %133 = vmatprep.subr.mxu0 0.0
  %134 = vmatpush1.msra.mxu0 0.0
  %135 = vmatprep.subr.mxu0 0.0
  %136 = vmatpush1.msra.mxu0 0.0
  %137 = vmatprep.subr.mxu0 0.0
  %138 = vmatpush1.msra.mxu0 0.0
  %139 = vmatprep.subr.mxu0 0.0
  %140 = vmatpush1.msra.mxu0 0.0
  %141 = vmatprep.subr.mxu0 0.0
  %142 = vmatpush1.msra.mxu0 0.0
  %143 = vmatprep.subr.mxu0 0.0
  %144 = vmatpush1.msra.mxu0 0.0
  %145 = vmatprep.subr.mxu0 0.0
  %146 = vmatpush1.msra.mxu0 0.0
  %147 = vmatprep.subr.mxu0 0.0
  %148 = vmatpush1.msra.mxu0 0.0
  %149 = vmatprep.subr.mxu0 0.0
  %150 = vmatpush1.msra.mxu0 0.0
  %151 = vmatprep.subr.mxu0 0.0
  %152 = vmatpush1.msra.mxu0 %v116
  %153 = vmatprep.subr.mxu0 0.0
  %154 = vmatpush1.msra.mxu0 %v115
  %155 = vmatprep.subr.mxu0 0.0
  %156 = vmatpush1.msra.mxu0 %v114
  %157 = vmatprep.subr.mxu0 0.0
  %158 = vmatpush1.msra.mxu0 %v113
  %159 = vmatprep.subr.mxu0 0.0
  %160 = vmatpush2.msra.mxu0 0.0
  %161 = vmatprep.subr.mxu0 0.0
  %162 = vmatpush2.msra.mxu0 0.0
  %163 = vmatprep.subr.mxu0 0.0
  %164 = vmatpush2.msra.mxu0 0.0
  %165 = vmatprep.subr.mxu0 0.0
  %166 = vmatpush2.msra.mxu0 0.0
  %167 = vmatprep.subr.mxu0 0.0
  %168 = vmatpush2.msra.mxu0 0.0
  %169 = vmatprep.subr.mxu0 0.0
  %170 = vmatpush2.msra.mxu0 0.0
  %171 = vmatprep.subr.mxu0 0.0
  %172 = vmatpush2.msra.mxu0 0.0
  %173 = vmatprep.subr.mxu0 0.0
  %174 = vmatpush2.msra.mxu0 0.0
  %175 = vmatprep.subr.mxu0 0.0
  %176 = vmatpush2.msra.mxu0 0.0
  %177 = vmatprep.subr.mxu0 0.0
  %178 = vmatpush2.msra.mxu0 0.0
  %179 = vmatprep.subr.mxu0 0.0
  %180 = vmatpush2.msra.mxu0 0.0
  %181 = vmatprep.subr.mxu0 0.0
  %182 = vmatpush2.msra.mxu0 0.0
  %183 = vmatprep.subr.mxu0 0.0
  %184 = vmatpush2.msra.mxu0 0.0
  %185 = vmatprep.subr.mxu0 0.0
  %186 = vmatpush2.msra.mxu0 0.0
  %187 = vmatprep.subr.mxu0 0.0
  %188 = vmatpush2.msra.mxu0 0.0
  %189 = vmatprep.subr.mxu0 0.0
  %190 = vmatpush2.msra.mxu0 0.0
  %191 = vmatprep.mubr.f32.mxu0 0.0
  %192 = vmatmul.mubr.f32.gmra.mxu0 %v125
  %v193 = vpop.f32.mrf.mxu0
  %v194 = vadd.f32 %v122, %v193
  %v195 = vpop.f32.mrf.mxu0
  %196 = vdwg.mxu0
  %v197 = vtanh.pop %v194
  %v198 = vld [vmem:[%s5] sm:$0xff]
  %v199 = vld [vmem:[%s5 + $0x8] sm:$0xff]
  %v200 = vld [vmem:[%s5 + $0x10] sm:$0xff]
  %v201 = vld [vmem:[%s5 + $0x18] sm:$0xff]
  %v202 = vld [vmem:[%s6] sm:$0x1]
  %v204 = vlaneseq
  %v205 = vshrl.u32 %v204, 7
  %v206 = vsub.s32 0, %v205
  %v207 = vrot.slane %v202, %v206
  %v210 = vsel %vm38, %v197, 0
  %212 = vmatprep.subr.mxu0 0.0
  %213 = vmatpush1.msra.mxu0 0.0
  %214 = vmatprep.subr.mxu0 0.0
  %215 = vmatpush1.msra.mxu0 0.0
  %216 = vmatprep.subr.mxu0 0.0
  %217 = vmatpush1.msra.mxu0 0.0
  %218 = vmatprep.subr.mxu0 0.0
  %219 = vmatpush1.msra.mxu0 0.0
  %220 = vmatprep.subr.mxu0 0.0
  %221 = vmatpush1.msra.mxu0 0.0
  %222 = vmatprep.subr.mxu0 0.0
  %223 = vmatpush1.msra.mxu0 0.0
  %224 = vmatprep.subr.mxu0 0.0
  %225 = vmatpush1.msra.mxu0 0.0
  %226 = vmatprep.subr.mxu0 0.0
  %227 = vmatpush1.msra.mxu0 0.0
  %228 = vmatprep.subr.mxu0 0.0
  %229 = vmatpush1.msra.mxu0 0.0
  %230 = vmatprep.subr.mxu0 0.0
  %231 = vmatpush1.msra.mxu0 0.0
  %232 = vmatprep.subr.mxu0 0.0
  %233 = vmatpush1.msra.mxu0 0.0
  %234 = vmatprep.subr.mxu0 0.0
  %235 = vmatpush1.msra.mxu0 0.0
  %236 = vmatprep.subr.mxu0 0.0
  %237 = vmatpush1.msra.mxu0 %v201
  %238 = vmatprep.subr.mxu0 0.0
  %239 = vmatpush1.msra.mxu0 %v200
  %240 = vmatprep.subr.mxu0 0.0
  %241 = vmatpush1.msra.mxu0 %v199
  %242 = vmatprep.subr.mxu0 0.0
  %243 = vmatpush1.msra.mxu0 %v198
  %244 = vmatprep.subr.mxu0 0.0
  %245 = vmatpush2.msra.mxu0 0.0
  %246 = vmatprep.subr.mxu0 0.0
  %247 = vmatpush2.msra.mxu0 0.0
  %248 = vmatprep.subr.mxu0 0.0
  %249 = vmatpush2.msra.mxu0 0.0
  %250 = vmatprep.subr.mxu0 0.0
  %251 = vmatpush2.msra.mxu0 0.0
  %252 = vmatprep.subr.mxu0 0.0
  %253 = vmatpush2.msra.mxu0 0.0
  %254 = vmatprep.subr.mxu0 0.0
  %255 = vmatpush2.msra.mxu0 0.0
  %256 = vmatprep.subr.mxu0 0.0
  %257 = vmatpush2.msra.mxu0 0.0
  %258 = vmatprep.subr.mxu0 0.0
  %259 = vmatpush2.msra.mxu0 0.0
  %260 = vmatprep.subr.mxu0 0.0
  %261 = vmatpush2.msra.mxu0 0.0
  %262 = vmatprep.subr.mxu0 0.0
  %263 = vmatpush2.msra.mxu0 0.0
  %264 = vmatprep.subr.mxu0 0.0
  %265 = vmatpush2.msra.mxu0 0.0
  %266 = vmatprep.subr.mxu0 0.0
  %267 = vmatpush2.msra.mxu0 0.0
  %268 = vmatprep.subr.mxu0 0.0
  %269 = vmatpush2.msra.mxu0 0.0
  %270 = vmatprep.subr.mxu0 0.0
  %271 = vmatpush2.msra.mxu0 0.0
  %272 = vmatprep.subr.mxu0 0.0
  %273 = vmatpush2.msra.mxu0 0.0
  %274 = vmatprep.subr.mxu0 0.0
  %275 = vmatpush2.msra.mxu0 0.0
  %276 = vmatprep.mubr.f32.mxu0 0.0
  %277 = vmatmul.mubr.f32.gmra.mxu0 %v210
  %v278 = vpop.f32.mrf.mxu0
  %v279 = vadd.f32 %v207, %v278
  %v280 = vpop.f32.mrf.mxu0
  %281 = vdwg.mxu0
  %282 = vst [vmem:[%s7] sm:$0xff] %v279
  // Predicated region
  $region30: #{only_obs_single_action_forward.1} parent=0 // pred_check
    _
  $region31: #{only_obs_single_action_forward.1} parent=0 // pred_check_branch
    %284 = sbr.rel (0) target = $region33
  $region32: #{only_obs_single_action_forward.1} parent=0 // pred_region
    _
  $region33: #{only_obs_single_action_forward.1} parent=0 // pred_fallthru
    _
  // Predicated region
  $region34: #{only_obs_single_action_forward.1} parent=0 // pred_check
    _
  $region35: #{only_obs_single_action_forward.1} parent=0 // pred_check_branch
    %286 = sbr.rel (0) target = $region37
  $region36: #{only_obs_single_action_forward.1} parent=0 // pred_region
    _
  $region37: #{only_obs_single_action_forward.1} parent=0 // pred_fallthru
    _

</llo_original>
